<compile_context>
chip_gen: v7x
topology: tpu7x:2x2x1
jax: 0.10.0
libtpu: 0.0.40
codegen_flags: <defaults>
</compile_context>

<pallas_src>
import jax
import jax.numpy as jnp
from jax.experimental import pallas as pl
from jax.experimental.pallas import tpu as pltpu


def _round_up(x, m):
    return (x + m - 1) // m * m


def _gated_mlp_kernel(x_ref, w1_ref, w2_ref, o_ref, acc_ref):
    # x_ref:   (tm, in)        VMEM  (resident across the hidden axis)
    # w1_ref:  (in, 2*th)      VMEM  (columns: [y_tile | gate_tile] for tile j)
    # w2_ref:  (th, out_p)     VMEM
    # o_ref:   (tm, out_p)     VMEM  (lane-dense, written on last hidden step)
    # acc_ref: (tm, out_p) f32 VMEM scratch accumulator
    j = pl.program_id(1)
    nj = pl.num_programs(1)

    @pl.when(j == 0)
    def _():
        acc_ref[...] = jnp.zeros_like(acc_ref)

    th = w2_ref.shape[0]  # static
    x = x_ref[...]

    # One fused MXU dot for both fc1 branches of this hidden tile.
    yg = jnp.dot(x, w1_ref[...], preferred_element_type=jnp.float32)  # (tm, 2*th)
    y = yg[:, :th]
    g = yg[:, th:]
    # SiLU gate in f32 (sigmoid goes to the EUP slot — free alongside MXU work).
    h = y * (g * jax.nn.sigmoid(g))

    acc_ref[...] += jnp.dot(
        h.astype(w2_ref.dtype), w2_ref[...], preferred_element_type=jnp.float32
    )

    @pl.when(j == nj - 1)
    def _():
        o_ref[...] = acc_ref[...].astype(o_ref.dtype)


def prepare_gated_mlp_weights(w1, w2, *, th=None, lane=128):
    """One-time weight preparation (do this at parameter-load time).

    w1: (2*hidden, in_features)  -- torch fc1.weight layout
    w2: (out_features, hidden)   -- torch fc2.weight layout
    Returns (w1_packed, w2_packed, meta).
      w1_packed: (in, 2*hidden), tile-interleaved [y_j | gate_j] blocks of width 2*th
      w2_packed: (hidden, out_p) with out padded to a multiple of 128 (lane-dense)
    """
    two_hidden, in_features = w1.shape
    hidden = two_hidden // 2
    out_features = w2.shape[0]

    if th is None:
        th = hidden
        for cand in (512, 256, 128):
            if hidden % cand == 0:
                th = cand
                break
    assert hidden % th == 0, "hidden tile must divide hidden"
    n_tiles = hidden // th
    out_p = _round_up(out_features, lane)

    w1y_t = jnp.transpose(w1[:hidden, :])   # (in, hidden)  "y" branch
    w1g_t = jnp.transpose(w1[hidden:, :])   # (in, hidden)  "gate" branch
    # Per-tile interleave so each grid step reads one contiguous (in, 2*th) block.
    w1_packed = jnp.concatenate(
        [
            w1y_t.reshape(in_features, n_tiles, 1, th),
            w1g_t.reshape(in_features, n_tiles, 1, th),
        ],
        axis=2,
    ).reshape(in_features, 2 * hidden)

    w2_t = jnp.transpose(w2)                # (hidden, out)
    w2_packed = jnp.pad(w2_t, ((0, 0), (0, out_p - out_features)))

    meta = dict(hidden=hidden, th=th, out_features=out_features, out_p=out_p)
    return w1_packed, w2_packed, meta


def gated_mlp(x, w1_packed, w2_packed, meta, *, tm=256):
    """x: (..., in_features); weights already prepared by prepare_gated_mlp_weights."""
    in_features = x.shape[-1]
    hidden = meta["hidden"]
    th = meta["th"]
    out_features = meta["out_features"]
    out_p = meta["out_p"]

    xm = x.reshape(-1, in_features)
    M = xm.shape[0]

    # Large default row tile for MXU occupancy; cap for tiny inputs, pad the rest.
    tm = min(tm, _round_up(M, 8))
    Mp = _round_up(M, tm)
    if Mp != M:
        xm = jnp.pad(xm, ((0, Mp - M), (0, 0)))

    n_m = Mp // tm
    n_h = hidden // th

    out = pl.pallas_call(
        _gated_mlp_kernel,
        out_shape=jax.ShapeDtypeStruct((Mp, out_p), x.dtype),
        grid_spec=pltpu.PrefetchScalarGridSpec(
            num_scalar_prefetch=0,
            grid=(n_m, n_h),
            in_specs=[
                pl.BlockSpec((tm, in_features), lambda i, j: (i, 0)),
                pl.BlockSpec((in_features, 2 * th), lambda i, j: (0, j)),
                pl.BlockSpec((th, out_p), lambda i, j: (j, 0)),
            ],
            out_specs=pl.BlockSpec((tm, out_p), lambda i, j: (i, 0)),
            scratch_shapes=[pltpu.VMEM((tm, out_p), jnp.float32)],
        ),
        compiler_params=pltpu.CompilerParams(
            dimension_semantics=("parallel", "arbitrary"),
            vmem_limit_bytes=64 << 20,
        ),
    )(xm, w1_packed, w2_packed)

    out = out[:M, :out_features]
    return out.reshape(*x.shape[:-1], out_features)


def _reference(x, w1, w2):
    hidden = w1.shape[0] // 2
    y_full = jnp.einsum("...i,hi->...h", x, w1)
    y, gate = y_full[..., :hidden], y_full[..., hidden:]
    h = y * (gate * jax.nn.sigmoid(gate))
    return jnp.einsum("...h,oh->...o", h, w2)


if __name__ == "__main__":
    # Module config (GatedMLP defaults): in_features=64 ->
    # hidden = round_up(int(8*64/3), 128) = 256, out_features = in_features.
    in_features = 64
    hidden_features = ((int(8 * in_features / 3) + 128 - 1) // 128) * 128  # 256
    out_features = in_features
    B, S = 2, 8

    key = jax.random.PRNGKey(0)
    kx, k1, k2 = jax.random.split(key, 3)

    x = jax.random.normal(kx, (B, S, in_features), dtype=jnp.float32)
    # Deterministic synthetic weights (torch nn.Linear layout: (out, in)).
    bound1 = 1.0 / (in_features ** 0.5)
    bound2 = 1.0 / (hidden_features ** 0.5)
    w1 = jax.random.uniform(
        k1, (2 * hidden_features, in_features), jnp.float32, -bound1, bound1)
    w2 = jax.random.uniform(
        k2, (out_features, hidden_features), jnp.float32, -bound2, bound2)

    # One-time weight prep (transpose / pack / pad). th=128 here so the small test
    # exercises the hidden-reduction (accumulator) path with 2 reduction steps.
    w1_p, w2_p, meta = prepare_gated_mlp_weights(w1, w2, th=128)

    out = gated_mlp(x, w1_p, w2_p, meta, tm=256)
    out = jax.block_until_ready(out)

    ref = _reference(x, w1, w2)
    assert out.shape == (B, S, out_features)
    assert jnp.allclose(out, ref, atol=1e-4, rtol=1e-4), "mismatch vs reference"

    print("KERNEL_OK")
</pallas_src>

<mosaic_0001>
module attributes {stable_mosaic.version = 11 : i64} {
  func.func @_gated_mlp_kernel(%arg0: i32, %arg1: i32, %arg2: memref<16x64xf32, #tpu.memory_space<vmem>>, %arg3: memref<64x256xf32, #tpu.memory_space<vmem>>, %arg4: memref<128x128xf32, #tpu.memory_space<vmem>>, %arg5: memref<16x128xf32, #tpu.memory_space<vmem>>, %arg6: memref<16x128xf32, #tpu.memory_space<vmem>>) attributes {dimension_semantics = [#tpu.dimension_semantics<parallel>, #tpu.dimension_semantics<arbitrary>], iteration_bounds = array<i64: 1, 2>, scalar_prefetch = 0 : i64, scratch_operands = 1 : i64, tpu.core_type = #tpu.core_type<tc>, window_params = [{transform_indices = @transform_0, window_bounds = array<i64: 16, 64>}, {transform_indices = @transform_1, window_bounds = array<i64: 64, 256>}, {transform_indices = @transform_2, window_bounds = array<i64: 128, 128>}, {transform_indices = @transform_3, window_bounds = array<i64: 16, 128>}]} {
    %c0_i32 = arith.constant 0 : i32
    %0 = arith.cmpi eq, %arg1, %c0_i32 : i32
    %1 = arith.extui %0 : i1 to i32
    %c0_i32_0 = arith.constant 0 : i32
    %2 = arith.cmpi ne, %1, %c0_i32_0 : i32
    scf.if %2 {
      %cst_13 = arith.constant 0.000000e+00 : f32
      %23 = vector.broadcast %cst_13 : f32 to vector<16x128xf32>
      %c0_14 = arith.constant 0 : index
      %c0_15 = arith.constant 0 : index
      %24 = vector.load %arg6[%c0_14, %c0_15] : memref<16x128xf32, #tpu.memory_space<vmem>>, vector<16x128xf32>
      tpu.vector_store %arg6[%c0_14, %c0_15], %23 {strides = array<i32>} : memref<16x128xf32, #tpu.memory_space<vmem>>, vector<16x128xf32>,
    } else {
    }
    %c0 = arith.constant 0 : index
    %c0_1 = arith.constant 0 : index
    %3 = vector.load %arg2[%c0, %c0_1] : memref<16x64xf32, #tpu.memory_space<vmem>>, vector<16x64xf32>
    %c0_2 = arith.constant 0 : index
    %c0_3 = arith.constant 0 : index
    %4 = vector.load %arg3[%c0_2, %c0_3] : memref<64x256xf32, #tpu.memory_space<vmem>>, vector<64x256xf32>
    %cst = arith.constant dense<0.000000e+00> : vector<16x256xf32>
    %5 = tpu.matmul %3, %4, %cst {dimension_numbers = #tpu.dot_dimension_numbers<[1], [0], [0], [1], [0, 0, 1, 1], [], []>} : vector<16x64xf32>, vector<64x256xf32>, vector<16x256xf32> -> vector<16x256xf32>
    %6 = vector.extract_strided_slice %5 {offsets = [0, 0], sizes = [16, 128], strides = [1, 1]} : vector<16x256xf32> to vector<16x128xf32>
    %7 = vector.extract_strided_slice %5 {offsets = [0, 128], sizes = [16, 128], strides = [1, 1]} : vector<16x256xf32> to vector<16x128xf32>
    %8 = arith.negf %7 : vector<16x128xf32>
    %9 = math.exp %8 : vector<16x128xf32>
    %cst_4 = arith.constant 1.000000e+00 : f32
    %10 = vector.broadcast %cst_4 : f32 to vector<16x128xf32>
    %11 = arith.addf %10, %9 : vector<16x128xf32>
    %12 = arith.divf %10, %11 : vector<16x128xf32>
    %13 = arith.mulf %7, %12 : vector<16x128xf32>
    %14 = arith.mulf %6, %13 : vector<16x128xf32>
    %c0_5 = arith.constant 0 : index
    %c0_6 = arith.constant 0 : index
    %15 = vector.load %arg6[%c0_5, %c0_6] : memref<16x128xf32, #tpu.memory_space<vmem>>, vector<16x128xf32>
    %c0_7 = arith.constant 0 : index
    %c0_8 = arith.constant 0 : index
    %16 = vector.load %arg4[%c0_7, %c0_8] : memref<128x128xf32, #tpu.memory_space<vmem>>, vector<128x128xf32>
    %cst_9 = arith.constant dense<0.000000e+00> : vector<16x128xf32>
    %17 = tpu.matmul %14, %16, %cst_9 {dimension_numbers = #tpu.dot_dimension_numbers<[1], [0], [0], [1], [0, 0, 1, 1], [], []>} : vector<16x128xf32>, vector<128x128xf32>, vector<16x128xf32> -> vector<16x128xf32>
    %18 = arith.addf %15, %17 : vector<16x128xf32>
    %c0_10 = arith.constant 0 : index
    %c0_11 = arith.constant 0 : index
    %19 = vector.load %arg6[%c0_10, %c0_11] : memref<16x128xf32, #tpu.memory_space<vmem>>, vector<16x128xf32>
    tpu.vector_store %arg6[%c0_10, %c0_11], %18 {strides = array<i32>} : memref<16x128xf32, #tpu.memory_space<vmem>>, vector<16x128xf32>,
    %c1_i32 = arith.constant 1 : i32
    %20 = arith.cmpi eq, %arg1, %c1_i32 : i32
    %21 = arith.extui %20 : i1 to i32
    %c0_i32_12 = arith.constant 0 : i32
    %22 = arith.cmpi ne, %21, %c0_i32_12 : i32
    scf.if %22 {
      %c0_13 = arith.constant 0 : index
      %c0_14 = arith.constant 0 : index
      %23 = vector.load %arg6[%c0_13, %c0_14] : memref<16x128xf32, #tpu.memory_space<vmem>>, vector<16x128xf32>
      %c0_15 = arith.constant 0 : index
      %c0_16 = arith.constant 0 : index
      %24 = vector.load %arg5[%c0_15, %c0_16] : memref<16x128xf32, #tpu.memory_space<vmem>>, vector<16x128xf32>
      tpu.vector_store %arg5[%c0_15, %c0_16], %23 {strides = array<i32>} : memref<16x128xf32, #tpu.memory_space<vmem>>, vector<16x128xf32>,
    } else {
    }
    return
  }
  func.func @transform_0(%arg0: i32, %arg1: i32) -> (i32, i32) {
    %c0_i32 = arith.constant 0 : i32
    %c0_i32_0 = arith.constant 0 : i32
    return %arg0, %c0_i32 : i32, i32
  }
  func.func @transform_1(%arg0: i32, %arg1: i32) -> (i32, i32) {
    %c0_i32 = arith.constant 0 : i32
    %c0_i32_0 = arith.constant 0 : i32
    return %c0_i32, %arg1 : i32, i32
  }
  func.func @transform_2(%arg0: i32, %arg1: i32) -> (i32, i32) {
    %c0_i32 = arith.constant 0 : i32
    %c0_i32_0 = arith.constant 0 : i32
    return %arg1, %c0_i32 : i32, i32
  }
  func.func @transform_3(%arg0: i32, %arg1: i32) -> (i32, i32) {
    %c0_i32 = arith.constant 0 : i32
    %c0_i32_0 = arith.constant 0 : i32
    return %arg0, %c0_i32 : i32, i32
  }
}

</mosaic_0001>

<llo_original>
// kernel: tpu_custom_call.1
$region0: #{tpu_custom_call.1}
  #allocation0 [shape = 'u32[]', space=smem, size = 0x4, offset = 0x4, fixed_abs, tag = 'smem constant byte address 0x4 - core index']
  #allocation1 [shape = 'u32[144,128]{1,0:T(1,128)}', space=vmem, size = 0x12000, scoped, tag = 'internal scratch']
  #allocation2 [shape = 'f32[16,128]{1,0:T(8,128)}', space=vmem, size = 0x2000, scoped, tag = 'scratch operand']
  %s0 = inlined_call_operand.hbm [shape: f32[16,64], index: 0, kind: input, shape index: {}]
  %s1 = inlined_call_operand.hbm [shape: f32[64,512], index: 1, kind: input, shape index: {}]
  %s2 = inlined_call_operand.hbm [shape: f32[256,128], index: 2, kind: input, shape index: {}]
  %s3 = inlined_call_operand.hbm [shape: f32[16,128], index: 3, kind: output, shape index: {}]
  %s4 = sld [smem:[#allocation0]]
  $region65: #{tpu_custom_call.1} parent=0
    _
  %s6 = ssub.s32 1, %s4
  %s7 = scalar_select 0, %s6, %s4
  $region1: #{tpu_custom_call.1} parent=0
    #allocation3 [shape = 'u8[8192]{0}', space=vmem, size = 0x2000, scoped, tag = 'input window, operand 0, single buffered']
    #allocation4 [shape = 's32[2]{0}', space=sflag, size = 0x8, scoped, tag = 'scoped memory for tpu_custom_call.1']
    #allocation5 [shape = 's32[2]{0}', space=sflag, size = 0x8, scoped, tag = 'scoped memory for tpu_custom_call.1']
    #allocation6 [shape = 'u8[131072]{0}', space=vmem, size = 0x20000, scoped, tag = 'input window, operand 1']
    #allocation7 [shape = 's32[2]{0}', space=sflag, size = 0x8, scoped, tag = 'scoped memory for tpu_custom_call.1']
    #allocation8 [shape = 'u8[131072]{0}', space=vmem, size = 0x20000, scoped, tag = 'input window, operand 2']
    #allocation9 [shape = 'u8[8192]{0}', space=vmem, size = 0x2000, scoped, tag = 'output window, operand 0, single buffered']
    %8 = vsyncpa [#allocation4], 0
    %9 = vsyncpa [#allocation7], 0
    %s10 = scalar_lea.sflag [#allocation7], 1
    %11 = vsyncpa %s10, 0
    %12 = vsyncpa [#allocation5], 0
    loop: start=0, step=1, limit=4
    $region2: #{tpu_custom_call.1} parent=1 // loop_pre_header
      _
    $region3: #{tpu_custom_call.1} parent=1 // loop_header
      %s14 = sphi 0, %s18
      %p15 = scmp.ge.s32.totalorder %s14, 4
      %s21 = sphi 0, %s33
      %s22 = sphi 0, %s29
      %s23 = sphi 0, %s21
      %s24 = sphi 0, %s22
      %s25 = sphi 0, %s23
      %s26 = sphi 0, %s24
      %s36 = sphi 0, %s38
      %s39 = sphi 0, %s36
      %s40 = sphi 0, %s39
      %s56 = sphi 0, %s40
      %s62 = sphi 0, %s64
      %s65 = sphi 0, %s62
      %s66 = sphi 0, %s65
      %s82 = sphi 0, %s66
      %s88 = sphi 0, %s90
      %s91 = sphi 0, %s88
      %s92 = sphi 0, %s91
      %s108 = sphi 0, %s92
      %s114 = sphi 0, %s116
      %s117 = sphi 0, %s114
      %s118 = sphi 0, %s117
      %s134 = sphi 0, %s118
    $region4: #{tpu_custom_call.1} parent=1 // loop_header_branch
      %17 = sbr.rel (%p15) target = $region8
    $region5: #{tpu_custom_call.1} parent=1 // loop_body
      %s19 = ssub.s32 %s14, 1
      %s20 = ssub.s32 %s14, 2
      %s27 = sadd.s32 1, %s22
      %p28 = scmp.ge.s32.totalorder %s27, 2
      %s29 = scalar_select %p28, 0, %s27
      %s30 = sadd.s32 1, %s21
      %s31 = scalar_select %p28, %s30, %s21
      %p32 = scmp.ge.s32.totalorder %s31, 1
      %s33 = scalar_select %p32, 0, %s31
      %s34 = ssub.s32 %s21, %s33
      %p35 = scmp.eq.s32.totalorder %s34, 0
      %s37 = sadd.s32 %s36, 1
      %s38 = scalar_select %p35, %s36, %s37
      %p41 = pneg %p35
      %p42 = scmp.eq.s32.totalorder %s14, 1
      %p43 = por %p41, %p42
      %p44 = scmp.ne.s32.totalorder %s36, %s39
      %p45 = scmp.eq.s32.totalorder %s14, 0
      %p46 = por %p44, %p45
      %p47 = scmp.ne.s32.totalorder %s36, %s39
      %p48 = scmp.eq.s32.totalorder %s19, 1
      %p49 = por %p47, %p48
      %p50 = scmp.ne.s32.totalorder %s39, %s40
      %p51 = scmp.eq.s32.totalorder %s19, 0
      %p52 = por %p50, %p51
      %p53 = scmp.ne.s32.totalorder %s39, %s40
      %p54 = scmp.eq.s32.totalorder %s20, 1
      %p55 = por %p53, %p54
      %p57 = scmp.ne.s32.totalorder %s40, %s56
      %p58 = scmp.eq.s32.totalorder %s20, 0
      %p59 = por %p57, %p58
      %s60 = ssub.s32 %s22, %s29
      %p61 = scmp.eq.s32.totalorder %s60, 0
      %s63 = sadd.s32 %s62, 1
      %s64 = scalar_select %p61, %s62, %s63
      %p67 = pneg %p61
      %p68 = scmp.eq.s32.totalorder %s14, 1
      %p69 = por %p67, %p68
      %p70 = scmp.ne.s32.totalorder %s62, %s65
      %p71 = scmp.eq.s32.totalorder %s14, 0
      %p72 = por %p70, %p71
      %p73 = scmp.ne.s32.totalorder %s62, %s65
      %p74 = scmp.eq.s32.totalorder %s19, 1
      %p75 = por %p73, %p74
      %p76 = scmp.ne.s32.totalorder %s65, %s66
      %p77 = scmp.eq.s32.totalorder %s19, 0
      %p78 = por %p76, %p77
      %p79 = scmp.ne.s32.totalorder %s65, %s66
      %p80 = scmp.eq.s32.totalorder %s20, 1
      %p81 = por %p79, %p80
      %p83 = scmp.ne.s32.totalorder %s66, %s82
      %p84 = scmp.eq.s32.totalorder %s20, 0
      %p85 = por %p83, %p84
      %s86 = ssub.s32 %s22, %s29
      %p87 = scmp.eq.s32.totalorder %s86, 0
      %s89 = sadd.s32 %s88, 1
      %s90 = scalar_select %p87, %s88, %s89
      %p93 = pneg %p87
      %p94 = scmp.eq.s32.totalorder %s14, 1
      %p95 = por %p93, %p94
      %p96 = scmp.ne.s32.totalorder %s88, %s91
      %p97 = scmp.eq.s32.totalorder %s14, 0
      %p98 = por %p96, %p97
      %p99 = scmp.ne.s32.totalorder %s88, %s91
      %p100 = scmp.eq.s32.totalorder %s19, 1
      %p101 = por %p99, %p100
      %p102 = scmp.ne.s32.totalorder %s91, %s92
      %p103 = scmp.eq.s32.totalorder %s19, 0
      %p104 = por %p102, %p103
      %p105 = scmp.ne.s32.totalorder %s91, %s92
      %p106 = scmp.eq.s32.totalorder %s20, 1
      %p107 = por %p105, %p106
      %p109 = scmp.ne.s32.totalorder %s92, %s108
      %p110 = scmp.eq.s32.totalorder %s20, 0
      %p111 = por %p109, %p110
      %s112 = ssub.s32 %s21, %s33
      %p113 = scmp.eq.s32.totalorder %s112, 0
      %s115 = sadd.s32 %s114, 1
      %s116 = scalar_select %p113, %s114, %s115
      %p119 = pneg %p113
      %p120 = scmp.eq.s32.totalorder %s14, 1
      %p121 = por %p119, %p120
      %p122 = scmp.ne.s32.totalorder %s114, %s117
      %p123 = scmp.eq.s32.totalorder %s14, 0
      %p124 = por %p122, %p123
      %p125 = scmp.ne.s32.totalorder %s114, %s117
      %p126 = scmp.eq.s32.totalorder %s19, 1
      %p127 = por %p125, %p126
      %p128 = scmp.ne.s32.totalorder %s117, %s118
      %p129 = scmp.eq.s32.totalorder %s19, 0
      %p130 = por %p128, %p129
      %p131 = scmp.ne.s32.totalorder %s117, %s118
      %p132 = scmp.eq.s32.totalorder %s20, 1
      %p133 = por %p131, %p132
      %p135 = scmp.ne.s32.totalorder %s118, %s134
      %p136 = scmp.eq.s32.totalorder %s20, 0
      %p137 = por %p135, %p136
      %p138 = scmp.le.s32.totalorder 1, %s14
      %p139 = scmp.lt.s32.totalorder %s14, 3
      %p140 = pnand %p138, %p139
      %p141 = pneg %p140
      // Predicated region
      $region9: #{tpu_custom_call.1} parent=5 // pred_check
        _
      $region10: #{tpu_custom_call.1} parent=5 // pred_check_branch
        %143 = sbr.rel (%p140) target = $region12
      $region11: #{tpu_custom_call.1} parent=5 // pred_region
        %s144 = ssub.s32 %s14, 1
        // Predicated region
        $region13: #{tpu_custom_call.1} parent=11 // pred_check
          %p145 = pneg %p52
        $region14: #{tpu_custom_call.1} parent=11 // pred_check_branch
          %147 = sbr.rel (%p145) target = $region16
        $region15: #{tpu_custom_call.1} parent=11 // pred_region
          %s148 = smul.u32 2, %s23
          %s150 = ssub.s32 256, 256
          %151 = vsyncadd [#allocation4], %s150
          %s152 = smul.addr %s148, 128
          %s153 = scalar_lea.hbm %s0, %s152
          %s154 = sshll.u32 [#allocation3], 4
          %s155 = int_to_ptr.vmem [resolvable:$true] %s154
          %160 = dma.hbm_to_vmem [thread:$0]  %s153, 256, %s155, [#allocation4], 128, 128, 8
        $region16: #{tpu_custom_call.1} parent=11 // pred_fallthru
          _
      $region12: #{tpu_custom_call.1} parent=5 // pred_fallthru
        _
      %p161 = scmp.lt.s32.totalorder %s14, 2
      // Predicated region
      $region17: #{tpu_custom_call.1} parent=5 // pred_check
        %p162 = pneg %p161
      $region18: #{tpu_custom_call.1} parent=5 // pred_check_branch
        %164 = sbr.rel (%p162) target = $region20
      $region19: #{tpu_custom_call.1} parent=5 // pred_region
        // Predicated region
        $region21: #{tpu_custom_call.1} parent=19 // pred_check
          %p165 = pneg %p72
        $region22: #{tpu_custom_call.1} parent=19 // pred_check_branch
          %167 = sbr.rel (%p165) target = $region24
        $region23: #{tpu_custom_call.1} parent=19 // pred_region
          %s168 = sand.u32 %s14, 1
          %s169 = scalar_lea.sflag [#allocation7], %s168
          %s170 = sand.u32 %s62, 1
          %s171 = smul.addr %s170, 128
          %s172 = scalar_lea.vmem [#allocation6], %s171
          %s173 = smul.u32 2, %s22
          %s175 = ssub.s32 2048, 2048
          %176 = vsyncadd %s169, %s175
          %s177 = smul.addr %s173, 128
          %s178 = scalar_lea.hbm %s1, %s177
          %s179 = sshll.u32 %s172, 4
          %s180 = int_to_ptr.vmem [resolvable:$true] %s179
          %185 = dma.hbm_to_vmem [thread:$0]  %s178, 2048, %s180, %s169, 512, 256, 16
        $region24: #{tpu_custom_call.1} parent=19 // pred_fallthru
          _
        // Predicated region
        $region25: #{tpu_custom_call.1} parent=19 // pred_check
          %p186 = pneg %p98
        $region26: #{tpu_custom_call.1} parent=19 // pred_check_branch
          %188 = sbr.rel (%p186) target = $region28
        $region27: #{tpu_custom_call.1} parent=19 // pred_region
          %s189 = sand.u32 %s14, 1
          %s190 = scalar_lea.sflag [#allocation7], %s189
          %s191 = sand.u32 %s88, 1
          %s192 = smul.addr %s191, 128
          %s193 = scalar_lea.vmem [#allocation8], %s192
          %s194 = smul.u32 16, %s22
          %s196 = ssub.s32 2048, 2048
          %197 = vsyncadd %s190, %s196
          %s198 = smul.addr %s194, 128
          %s199 = scalar_lea.hbm %s2, %s198
          %s200 = sshll.u32 %s193, 4
          %s201 = int_to_ptr.vmem [resolvable:$true] %s200
          %206 = dma.hbm_to_vmem [thread:$0]  %s199, 2048, %s201, %s190, 128, 128, 8
        $region28: #{tpu_custom_call.1} parent=19 // pred_fallthru
          _
      $region20: #{tpu_custom_call.1} parent=5 // pred_fallthru
        _
      %p207 = scmp.le.s32.totalorder 1, %s14
      %p208 = scmp.lt.s32.totalorder %s14, 3
      %p209 = pnand %p207, %p208
      %p210 = pneg %p209
      // Predicated region
      $region29: #{tpu_custom_call.1} parent=5 // pred_check
        _
      $region30: #{tpu_custom_call.1} parent=5 // pred_check_branch
        %212 = sbr.rel (%p209) target = $region32
      $region31: #{tpu_custom_call.1} parent=5 // pred_region
        %s213 = ssub.s32 %s14, 1
        // Predicated region
        $region33: #{tpu_custom_call.1} parent=31 // pred_check
          %p214 = pneg %p52
        $region34: #{tpu_custom_call.1} parent=31 // pred_check_branch
          %216 = sbr.rel (%p214) target = $region36
        $region35: #{tpu_custom_call.1} parent=31 // pred_region
          %217 = dma.done [#allocation4], 256
        $region36: #{tpu_custom_call.1} parent=31 // pred_fallthru
          _
        %s218 = sand.u32 %s19, 1
        %s219 = scalar_lea.sflag [#allocation7], %s218
        %s220 = sand.u32 %s65, 1
        %s221 = smul.addr %s220, 128
        %s222 = scalar_lea.vmem [#allocation6], %s221
        // Predicated region
        $region37: #{tpu_custom_call.1} parent=31 // pred_check
          %p223 = pneg %p78
        $region38: #{tpu_custom_call.1} parent=31 // pred_check_branch
          %225 = sbr.rel (%p223) target = $region40
        $region39: #{tpu_custom_call.1} parent=31 // pred_region
          %226 = dma.done %s219, 2048
        $region40: #{tpu_custom_call.1} parent=31 // pred_fallthru
          _
        %s227 = sand.u32 %s19, 1
        %s228 = scalar_lea.sflag [#allocation7], %s227
        %s229 = sand.u32 %s91, 1
        %s230 = smul.addr %s229, 128
        %s231 = scalar_lea.vmem [#allocation8], %s230
        // Predicated region
        $region41: #{tpu_custom_call.1} parent=31 // pred_check
          %p232 = pneg %p104
        $region42: #{tpu_custom_call.1} parent=31 // pred_check_branch
          %234 = sbr.rel (%p232) target = $region44
        $region43: #{tpu_custom_call.1} parent=31 // pred_region
          %235 = dma.done %s228, 2048
        $region44: #{tpu_custom_call.1} parent=31 // pred_fallthru
          _
        %p236 = pneg %p52
        %p237 = pneg %p49
        %s238 = sand.u32 %s19, 1
        %s239 = scalar_lea.sflag [#allocation7], %s238
        %s240 = sand.u32 %s65, 1
        %s241 = smul.addr %s240, 128
        %s242 = scalar_lea.vmem [#allocation6], %s241
        %p243 = pneg %p78
        %p244 = pneg %p75
        %s245 = sand.u32 %s19, 1
        %s246 = scalar_lea.sflag [#allocation7], %s245
        %s247 = sand.u32 %s91, 1
        %s248 = smul.addr %s247, 128
        %s249 = scalar_lea.vmem [#allocation8], %s248
        %p250 = pneg %p104
        %p251 = pneg %p101
        %p252 = pneg %p130
        %p253 = pneg %p127
        %s254 = smul.u32 2, %s23
        %s255 = smul.u32 2, %s24
        %s256 = smul.u32 16, %s24
        %s257 = smul.u32 2, %s23
        %p258 = scmp.eq.s32.totalorder %s24, 0
        // Predicated region
        $region45: #{tpu_custom_call.1} parent=31 // pred_check
          %p259 = pneg %p258
        $region46: #{tpu_custom_call.1} parent=31 // pred_check_branch
          %261 = sbr.rel (%p259) target = $region48
        $region47: #{tpu_custom_call.1} parent=31 // pred_region
          %262 = vst [vmem:[#allocation2] sm:$0xff] 0.0
          %263 = vst [vmem:[#allocation2 + $0x8] sm:$0xff] 0.0
        $region48: #{tpu_custom_call.1} parent=31 // pred_fallthru
          _
        %v264 = vld [vmem:[#allocation3] sm:$0xff]
        %v265 = vld [vmem:[#allocation3 + $0x8] sm:$0xff]
        %v266 = vld [vmem:[%s222] sm:$0xff]
        %v267 = vld [vmem:[%s222 + $0x8] sm:$0xff]
        %v268 = vld [vmem:[%s222 + $0x10] sm:$0xff]
        %v269 = vld [vmem:[%s222 + $0x18] sm:$0xff]
        %v270 = vld [vmem:[%s222 + $0x20] sm:$0xff]
        %v271 = vld [vmem:[%s222 + $0x28] sm:$0xff]
        %v272 = vld [vmem:[%s222 + $0x30] sm:$0xff]
        %v273 = vld [vmem:[%s222 + $0x38] sm:$0xff]
        %v274 = vld [vmem:[%s222 + $0x40] sm:$0xff]
        %v275 = vld [vmem:[%s222 + $0x48] sm:$0xff]
        %v276 = vld [vmem:[%s222 + $0x50] sm:$0xff]
        %v277 = vld [vmem:[%s222 + $0x58] sm:$0xff]
        %v278 = vld [vmem:[%s222 + $0x60] sm:$0xff]
        %v279 = vld [vmem:[%s222 + $0x68] sm:$0xff]
        %v280 = vld [vmem:[%s222 + $0x70] sm:$0xff]
        %v281 = vld [vmem:[%s222 + $0x78] sm:$0xff]
        %vm282 = vcmask 523264
        %v284 = vsel %vm282, %v264, 0
        %v287 = vsel %vm282, %v265, 0
        %289 = vmatprep.subr.mxu0 %v267
        %290 = vmatpush1.msra.mxu0 %v266
        %291 = vmatprep.subr.mxu0 %v269
        %292 = vmatpush1.msra.mxu0 %v268
        %293 = vmatprep.subr.mxu0 %v271
        %294 = vmatpush1.msra.mxu0 %v270
        %295 = vmatprep.subr.mxu0 %v273
        %296 = vmatpush1.msra.mxu0 %v272
        %297 = vmatprep.subr.mxu0 %v275
        %298 = vmatpush1.msra.mxu0 %v274
        %299 = vmatprep.subr.mxu0 %v277
        %300 = vmatpush1.msra.mxu0 %v276
        %301 = vmatprep.subr.mxu0 %v279
        %302 = vmatpush1.msra.mxu0 %v278
        %303 = vmatprep.subr.mxu0 %v281
        %304 = vmatpush1.msra.mxu0 %v280
        %305 = vmatprep.subr.mxu0 0.0
        %306 = vmatpush1.msra.mxu0 0.0
        %307 = vmatprep.subr.mxu0 0.0
        %308 = vmatpush1.msra.mxu0 0.0
        %309 = vmatprep.subr.mxu0 0.0
        %310 = vmatpush1.msra.mxu0 0.0
        %311 = vmatprep.subr.mxu0 0.0
        %312 = vmatpush1.msra.mxu0 0.0
        %313 = vmatprep.subr.mxu0 0.0
        %314 = vmatpush1.msra.mxu0 0.0
        %315 = vmatprep.subr.mxu0 0.0
        %316 = vmatpush1.msra.mxu0 0.0
        %317 = vmatprep.subr.mxu0 0.0
        %318 = vmatpush1.msra.mxu0 0.0
        %319 = vmatprep.subr.mxu0 0.0
        %320 = vmatpush1.msra.mxu0 0.0
        %321 = vmatprep.subr.mxu0 0.0
        %322 = vmatpush1.msra.mxu0 0.0
        %323 = vmatprep.subr.mxu0 0.0
        %324 = vmatpush1.msra.mxu0 0.0
        %325 = vmatprep.subr.mxu0 0.0
        %326 = vmatpush1.msra.mxu0 0.0
        %327 = vmatprep.subr.mxu0 0.0
        %328 = vmatpush1.msra.mxu0 0.0
        %329 = vmatprep.subr.mxu0 0.0
        %330 = vmatpush1.msra.mxu0 0.0
        %331 = vmatprep.subr.mxu0 0.0
        %332 = vmatpush1.msra.mxu0 0.0
        %333 = vmatprep.subr.mxu0 0.0
        %334 = vmatpush1.msra.mxu0 0.0
        %335 = vmatprep.subr.mxu0 0.0
        %336 = vmatpush1.msra.mxu0 0.0
        %337 = vmatprep.subr.mxu0 0.0
        %338 = vmatpush1.msra.mxu0 0.0
        %339 = vmatprep.subr.mxu0 0.0
        %340 = vmatpush1.msra.mxu0 0.0
        %341 = vmatprep.subr.mxu0 0.0
        %342 = vmatpush1.msra.mxu0 0.0
        %343 = vmatprep.subr.mxu0 0.0
        %344 = vmatpush1.msra.mxu0 0.0
        %345 = vmatprep.subr.mxu0 0.0
        %346 = vmatpush1.msra.mxu0 0.0
        %347 = vmatprep.subr.mxu0 0.0
        %348 = vmatpush1.msra.mxu0 0.0
        %349 = vmatprep.subr.mxu0 0.0
        %350 = vmatpush1.msra.mxu0 0.0
        %351 = vmatprep.subr.mxu0 0.0
        %352 = vmatpush1.msra.mxu0 0.0
        %353 = vmatprep.mubr.f32.mxu0 0.0
        %354 = vmatmul.mubr.f32.gmra.mrb[0].mxu0 %v284
        %v355 = vpop.f32.mrb[0].mxu0
        %v356 = vadd.f32 0.0, %v355
        %v357 = vpop.f32.mrb[0].mxu0
        %v358 = vadd.f32 0.0, %v357
        %359 = vmatprep.mubr.f32.mxu0 0.0
        %360 = vmatmul.mubr.f32.gmra.mrb[0].mxu0 %v287
        %v361 = vpop.f32.mrb[0].mxu0
        %v362 = vadd.f32 0.0, %v361
        %v363 = vpop.f32.mrb[0].mxu0
        %v364 = vadd.f32 0.0, %v363
        %365 = vdwg.mxu0
        %v366 = vxor.u32 %v358, 2147483648
        %v367 = vxor.u32 %v364, 2147483648
        %v368 = vmul.f32 %v366, 1.442695
        %v369 = vpow.pop %v368
        %v370 = vmul.f32 %v367, 1.442695
        %v371 = vpow.pop %v370
        %v372 = vadd.f32 %v369, 1.0
        %v373 = vadd.f32 %v371, 1.0
        %v374 = vrcp.pop %v372
        %v375 = vmul.f32 1.0, %v374
        %v376 = vrcp.pop %v373
        %v377 = vmul.f32 1.0, %v376
        %v378 = vmul.f32 %v358, %v375
        %v379 = vmul.f32 %v364, %v377
        %v380 = vmul.f32 %v356, %v378
        %v381 = vmul.f32 %v362, %v379
        %v382 = vld [vmem:[#allocation2] sm:$0xff]
        %v383 = vld [vmem:[#allocation2 + $0x8] sm:$0xff]
        %v384 = vld [vmem:[%s231] sm:$0xff]
        %v385 = vld [vmem:[%s231 + $0x8] sm:$0xff]
        %v386 = vld [vmem:[%s231 + $0x10] sm:$0xff]
        %v387 = vld [vmem:[%s231 + $0x18] sm:$0xff]
        %v388 = vld [vmem:[%s231 + $0x20] sm:$0xff]
        %v389 = vld [vmem:[%s231 + $0x28] sm:$0xff]
        %v390 = vld [vmem:[%s231 + $0x30] sm:$0xff]
        %v391 = vld [vmem:[%s231 + $0x38] sm:$0xff]
        %v392 = vld [vmem:[%s231 + $0x40] sm:$0xff]
        %v393 = vld [vmem:[%s231 + $0x48] sm:$0xff]
        %v394 = vld [vmem:[%s231 + $0x50] sm:$0xff]
        %v395 = vld [vmem:[%s231 + $0x58] sm:$0xff]
        %v396 = vld [vmem:[%s231 + $0x60] sm:$0xff]
        %v397 = vld [vmem:[%s231 + $0x68] sm:$0xff]
        %v398 = vld [vmem:[%s231 + $0x70] sm:$0xff]
        %v399 = vld [vmem:[%s231 + $0x78] sm:$0xff]
        %400 = vmatprep.subr.mxu0 0.0
        %401 = vmatpush1.msra.mxu0 %v384
        %402 = vmatprep.subr.mxu0 0.0
        %403 = vmatpush1.msra.mxu0 %v385
        %404 = vmatprep.subr.mxu0 0.0
        %405 = vmatpush1.msra.mxu0 %v386
        %406 = vmatprep.subr.mxu0 0.0
        %407 = vmatpush1.msra.mxu0 %v387
        %408 = vmatprep.subr.mxu0 0.0
        %409 = vmatpush1.msra.mxu0 %v388
        %410 = vmatprep.subr.mxu0 0.0
        %411 = vmatpush1.msra.mxu0 %v389
        %412 = vmatprep.subr.mxu0 0.0
        %413 = vmatpush1.msra.mxu0 %v390
        %414 = vmatprep.subr.mxu0 0.0
        %415 = vmatpush1.msra.mxu0 %v391
        %416 = vmatprep.subr.mxu0 0.0
        %417 = vmatpush1.msra.mxu0 %v392
        %418 = vmatprep.subr.mxu0 0.0
        %419 = vmatpush1.msra.mxu0 %v393
        %420 = vmatprep.subr.mxu0 0.0
        %421 = vmatpush1.msra.mxu0 %v394
        %422 = vmatprep.subr.mxu0 0.0
        %423 = vmatpush1.msra.mxu0 %v395
        %424 = vmatprep.subr.mxu0 0.0
        %425 = vmatpush1.msra.mxu0 %v396
        %426 = vmatprep.subr.mxu0 0.0
        %427 = vmatpush1.msra.mxu0 %v397
        %428 = vmatprep.subr.mxu0 0.0
        %429 = vmatpush1.msra.mxu0 %v398
        %430 = vmatprep.subr.mxu0 0.0
        %431 = vmatpush1.msra.mxu0 %v399
        %432 = vmatprep.subr.mxu0 0.0
        %433 = vmatpush1.msra.mxu0 0.0
        %434 = vmatprep.subr.mxu0 0.0
        %435 = vmatpush1.msra.mxu0 0.0
        %436 = vmatprep.subr.mxu0 0.0
        %437 = vmatpush1.msra.mxu0 0.0
        %438 = vmatprep.subr.mxu0 0.0
        %439 = vmatpush1.msra.mxu0 0.0
        %440 = vmatprep.subr.mxu0 0.0
        %441 = vmatpush1.msra.mxu0 0.0
        %442 = vmatprep.subr.mxu0 0.0
        %443 = vmatpush1.msra.mxu0 0.0
        %444 = vmatprep.subr.mxu0 0.0
        %445 = vmatpush1.msra.mxu0 0.0
        %446 = vmatprep.subr.mxu0 0.0
        %447 = vmatpush1.msra.mxu0 0.0
        %448 = vmatprep.subr.mxu0 0.0
        %449 = vmatpush1.msra.mxu0 0.0
        %450 = vmatprep.subr.mxu0 0.0
        %451 = vmatpush1.msra.mxu0 0.0
        %452 = vmatprep.subr.mxu0 0.0
        %453 = vmatpush1.msra.mxu0 0.0
        %454 = vmatprep.subr.mxu0 0.0
        %455 = vmatpush1.msra.mxu0 0.0
        %456 = vmatprep.subr.mxu0 0.0
        %457 = vmatpush1.msra.mxu0 0.0
        %458 = vmatprep.subr.mxu0 0.0
        %459 = vmatpush1.msra.mxu0 0.0
        %460 = vmatprep.subr.mxu0 0.0
        %461 = vmatpush1.msra.mxu0 0.0
        %462 = vmatprep.subr.mxu0 0.0
        %463 = vmatpush1.msra.mxu0 0.0
        %464 = vmatprep.mubr.f32.mxu0 0.0
        %465 = vmatmul.mubr.f32.gmra.mrb[0].mxu0 %v380
        %v466 = vpop.f32.mrb[0].mxu0
        %v467 = vadd.f32 0.0, %v466
        %v468 = vpop.f32.mrb[0].mxu0
        %469 = vmatprep.mubr.f32.mxu0 0.0
        %470 = vmatmul.mubr.f32.gmra.mrb[0].mxu0 %v381
        %v471 = vpop.f32.mrb[0].mxu0
        %v472 = vadd.f32 0.0, %v471
        %v473 = vpop.f32.mrb[0].mxu0
        %474 = vdwg.mxu0
        %v475 = vadd.f32 %v382, %v467
        %v476 = vadd.f32 %v383, %v472
        %477 = vst [vmem:[#allocation2] sm:$0xff] %v475
        %478 = vst [vmem:[#allocation2 + $0x8] sm:$0xff] %v476
        %p479 = scmp.eq.s32.totalorder %s24, 1
        // Predicated region
        $region49: #{tpu_custom_call.1} parent=31 // pred_check
          %p480 = pneg %p479
        $region50: #{tpu_custom_call.1} parent=31 // pred_check_branch
          %482 = sbr.rel (%p480) target = $region52
        $region51: #{tpu_custom_call.1} parent=31 // pred_region
          %v483 = vld [vmem:[#allocation2] sm:$0xff]
          %v484 = vld [vmem:[#allocation2 + $0x8] sm:$0xff]
          %485 = vst [vmem:[#allocation9] sm:$0xff] %v483
          %486 = vst [vmem:[#allocation9 + $0x8] sm:$0xff] %v484
        $region52: #{tpu_custom_call.1} parent=31 // pred_fallthru
          _
        // Predicated region
        $region53: #{tpu_custom_call.1} parent=31 // pred_check
          %p487 = pneg %p127
        $region54: #{tpu_custom_call.1} parent=31 // pred_check_branch
          %489 = sbr.rel (%p487) target = $region56
        $region55: #{tpu_custom_call.1} parent=31 // pred_region
          %s490 = smul.u32 2, %s23
          %s492 = ssub.s32 256, 256
          %493 = vsyncadd [#allocation5], %s492
          %s494 = smul.addr %s490, 128
          %s495 = scalar_lea.hbm %s3, %s494
          %s496 = sshll.u32 [#allocation9], 4
          %s497 = int_to_ptr.vmem [resolvable:$true] %s496
          %502 = dma.vmem_to_hbm [thread:$0]  %s497, 256, %s495, [#allocation5], 128, 128, 8
        $region56: #{tpu_custom_call.1} parent=31 // pred_fallthru
          _
        // Predicated region
        $region57: #{tpu_custom_call.1} parent=31 // pred_check
          %p503 = pneg %p127
        $region58: #{tpu_custom_call.1} parent=31 // pred_check_branch
          %505 = sbr.rel (%p503) target = $region60
        $region59: #{tpu_custom_call.1} parent=31 // pred_region
          %506 = dma.done [#allocation5], 256
        $region60: #{tpu_custom_call.1} parent=31 // pred_fallthru
          _
      $region32: #{tpu_custom_call.1} parent=5 // pred_fallthru
        _
      %p507 = scmp.le.s32.totalorder 2, %s14
      // Predicated region
      $region61: #{tpu_custom_call.1} parent=5 // pred_check
        %p508 = pneg %p507
      $region62: #{tpu_custom_call.1} parent=5 // pred_check_branch
        %510 = sbr.rel (%p508) target = $region64
      $region63: #{tpu_custom_call.1} parent=5 // pred_region
        %s511 = ssub.s32 %s14, 2
      $region64: #{tpu_custom_call.1} parent=5 // pred_fallthru
        _
    $region6: #{tpu_custom_call.1} parent=1 // loop_footer
      %s18 = sadd.s32 1, %s14
    $region7: #{tpu_custom_call.1} parent=1 // loop_footer_branch
      %13 = sbr.rel target = $region3
    $region8: #{tpu_custom_call.1} parent=1 // loop_exit
      _
    %512 = vsyncpa [#allocation4], 1
    %s513 = scalar_lea.sflag [#allocation4], 1
    %514 = vsyncpa %s513, 1
    %515 = vsyncpa [#allocation7], 1
    %s516 = scalar_lea.sflag [#allocation7], 1
    %517 = vsyncpa %s516, 1
    %518 = vsyncpa [#allocation5], 1
    %s519 = scalar_lea.sflag [#allocation5], 1
    %520 = vsyncpa %s519, 1

</llo_original>
